<compile_context>
chip_gen: v7x
topology: tpu7x:2x2x1
jax: 0.10.0
libtpu: 0.0.40
codegen_flags: <defaults>
</compile_context>

<pallas_src>
import jax
import jax.numpy as jnp
from jax.experimental import pallas as pl
from jax.experimental.pallas import tpu as pltpu


def _round_up(n, m):
    return ((n + m - 1) // m) * m


def mlp_kernel(x_ref, w1_ref, b1_ref, w2_ref, b2_ref, w3_ref, b3_ref, o_ref):
    # x_ref: (TB, in_dim) f32 batch tile.  Weights are bf16, biases f32,
    # all VMEM-resident across grid steps (constant index_maps).
    out_cols = o_ref.shape[-1]

    x = x_ref[...].astype(jnp.bfloat16)

    # Layer 1: Linear + tanh (bias add / tanh in f32)
    h = jnp.dot(x, w1_ref[...], preferred_element_type=jnp.float32) + b1_ref[...]
    h = jnp.tanh(h)

    # Layer 2: Linear + tanh
    h = jnp.dot(h.astype(jnp.bfloat16), w2_ref[...],
                preferred_element_type=jnp.float32) + b2_ref[...]
    h = jnp.tanh(h)

    # Layer 3 (final): Linear, no activation (activate_final=False).
    # w3 is 128-wide for the MXU; only the first `out_cols` columns are real
    # (the rest are zero) and only those are written to HBM.
    y = jnp.dot(h.astype(jnp.bfloat16), w3_ref[...],
                preferred_element_type=jnp.float32) + b3_ref[...]

    o_ref[...] = y[:, :out_cols].astype(o_ref.dtype)


def pad_params(params):
    """Pad hidden / output widths to 128 lanes (exact: zero cols/rows and
    tanh(0)=0 contribute nothing) and pre-cast weights to bf16 for the MXU.
    Biases stay f32 (bias add runs on the VPU in f32).  The input feature
    dim is left unpadded (K=3 is fine on the MXU)."""
    w1, b1, w2, b2, w3, b3 = params
    in_dim = w1.shape[0]
    widths = [w1.shape[1], w2.shape[1], w3.shape[1]]
    wp = [_round_up(w, 128) for w in widths]

    def pad_w(w, r, c):
        out = jnp.zeros((r, c), jnp.float32)
        return out.at[: w.shape[0], : w.shape[1]].set(w).astype(jnp.bfloat16)

    def pad_b(b, c):
        out = jnp.zeros((1, c), jnp.float32)
        return out.at[:, : b.shape[1]].set(b)

    padded = (
        pad_w(w1, in_dim, wp[0]), pad_b(b1, wp[0]),
        pad_w(w2, wp[0], wp[1]), pad_b(b2, wp[1]),
        pad_w(w3, wp[1], wp[2]), pad_b(b3, wp[2]),
    )
    return padded, in_dim, widths[-1]


def mlp_forward(x, padded_params, out_dim, *, block_b=2048):
    """x: (B, input_dim) float32.  padded_params: output of pad_params."""
    w1, b1, w2, b2, w3, b3 = padded_params
    B, in_dim = x.shape
    h1 = w1.shape[1]
    h2 = w2.shape[1]
    # Narrow HBM output: only 8 lanes (>= real out_dim), last dim == full
    # array dim so the BlockSpec is legal; wrapper slices the real columns.
    out_cols = _round_up(out_dim, 8)

    # Batch tile: large enough to amortize the ~0.35us per-step overhead,
    # small enough that double-buffered tiles stay a few MiB of VMEM.
    b8 = _round_up(B, 8)
    tb = min(block_b, b8)
    # v7x: make sure the single "parallel" grid axis has >= 2 blocks so both
    # TensorCores get work (instead of collapsing to grid=(1,)).
    if tb >= b8 and b8 >= 16:
        tb = _round_up(b8 // 2, 8)
    b_pad = _round_up(B, tb)
    n_blocks = b_pad // tb

    # Pad batch rows only (no feature padding pass); padded rows are sliced
    # away below (they contain bias-through-tanh garbage, which is fine).
    x_in = x if b_pad == B else jnp.pad(x, ((0, b_pad - B), (0, 0)))

    row_map = lambda i: (i, 0)     # x / out tiles march along the batch axis
    const_map = lambda i: (0, 0)   # weights & biases stay VMEM-resident

    flops = 2 * b_pad * (in_dim * h1 + h1 * h2 + h2 * w3.shape[1])
    transcendentals = b_pad * (h1 + h2)
    bytes_accessed = (
        4 * b_pad * in_dim + 4 * b_pad * out_cols
        + 2 * (w1.size + w2.size + w3.size)
        + 4 * (b1.size + b2.size + b3.size)
    )

    out = pl.pallas_call(
        mlp_kernel,
        out_shape=jax.ShapeDtypeStruct((b_pad, out_cols), jnp.float32),
        grid=(n_blocks,),
        in_specs=[
            pl.BlockSpec((tb, in_dim), row_map),
            pl.BlockSpec(w1.shape, const_map),
            pl.BlockSpec(b1.shape, const_map),
            pl.BlockSpec(w2.shape, const_map),
            pl.BlockSpec(b2.shape, const_map),
            pl.BlockSpec(w3.shape, const_map),
            pl.BlockSpec(b3.shape, const_map),
        ],
        out_specs=pl.BlockSpec((tb, out_cols), row_map),
        compiler_params=pltpu.CompilerParams(
            dimension_semantics=("parallel",)),
        cost_estimate=pl.CostEstimate(
            flops=flops,
            transcendentals=transcendentals,
            bytes_accessed=bytes_accessed),
    )(x_in, w1, b1, w2, b2, w3, b3)

    # Drop padded batch rows and padded output lanes.
    return out[:B, :out_dim]


def init_mlp_params(key, input_dim, layer_widths):
    """Deterministic init mimicking PyTorch nn.Linear default:
    U(-1/sqrt(fan_in), 1/sqrt(fan_in)) for weight and bias.
    Weights stored as (in_dim, out_dim)."""
    params = []
    prev = input_dim
    for width in layer_widths:
        key, kw, kb = jax.random.split(key, 3)
        bound = 1.0 / jnp.sqrt(jnp.float32(prev))
        w = jax.random.uniform(kw, (prev, width), jnp.float32, -bound, bound)
        b = jax.random.uniform(kb, (1, width), jnp.float32, -bound, bound)
        params.extend([w, b])
        prev = width
    return tuple(params)


def mlp_reference(x, params):
    """Plain-JAX f32 reference for sanity checking (unpadded params)."""
    w1, b1, w2, b2, w3, b3 = params
    h = jnp.tanh(x @ w1 + b1)
    h = jnp.tanh(h @ w2 + b2)
    return h @ w3 + b3


if __name__ == "__main__":
    # Module defaults: layer_widths=[100, 100, 2], activation_fn=tanh,
    # activate_final=False.  Small input_dim consistent with DSBM-Gaussian
    # usage (x concatenated with t -> small feature dim).
    input_dim = 3
    layer_widths = [100, 100, 2]

    key = jax.random.PRNGKey(0)
    key, kx = jax.random.split(key)

    params = init_mlp_params(key, input_dim, layer_widths)
    padded_params, _, out_dim = pad_params(params)

    # bf16 matmuls with f32 accumulation: loosen tolerances vs. f32 reference.
    ATOL = 5e-2

    # 1) Small-batch check (single grid step).
    x_small = jax.random.normal(kx, (8, input_dim), jnp.float32)
    out_small = jax.block_until_ready(mlp_forward(x_small, padded_params, out_dim))
    ref_small = mlp_reference(x_small, params)
    assert out_small.shape == (8, out_dim)
    assert jnp.allclose(out_small, ref_small, atol=ATOL), "mismatch (small batch)"

    # 2) Multi-grid-step check with ragged batch (B=300, tile=128 -> grid=(3,)):
    #    exercises batch tiling, row padding and VMEM-resident weights.
    key, kx2 = jax.random.split(key)
    x_big = jax.random.normal(kx2, (300, input_dim), jnp.float32)
    out_big = jax.block_until_ready(
        mlp_forward(x_big, padded_params, out_dim, block_b=128))
    ref_big = mlp_reference(x_big, params)
    assert out_big.shape == (300, out_dim)
    assert jnp.allclose(out_big, ref_big, atol=ATOL), "mismatch (tiled batch)"

    # 3) Default-tile path: B=300 with block_b=2048 -> tile halved to 152,
    #    grid=(2,) so both v7x TensorCores would be occupied.
    out_def = jax.block_until_ready(mlp_forward(x_big, padded_params, out_dim))
    assert out_def.shape == (300, out_dim)
    assert jnp.allclose(out_def, ref_big, atol=ATOL), "mismatch (default tile)"

    print("KERNEL_OK")
</pallas_src>

<mosaic_0001>
module attributes {stable_mosaic.version = 11 : i64} {
  func.func @mlp_kernel(%arg0: i32, %arg1: memref<8x3xf32, #tpu.memory_space<vmem>>, %arg2: memref<3x128xbf16, #tpu.memory_space<vmem>>, %arg3: memref<1x128xf32, #tpu.memory_space<vmem>>, %arg4: memref<128x128xbf16, #tpu.memory_space<vmem>>, %arg5: memref<1x128xf32, #tpu.memory_space<vmem>>, %arg6: memref<128x128xbf16, #tpu.memory_space<vmem>>, %arg7: memref<1x128xf32, #tpu.memory_space<vmem>>, %arg8: memref<8x8xf32, #tpu.memory_space<vmem>>) attributes {dimension_semantics = [#tpu.dimension_semantics<parallel>], iteration_bounds = array<i64: 1>, scalar_prefetch = 0 : i64, scratch_operands = 0 : i64, tpu.core_type = #tpu.core_type<tc>, window_params = [{transform_indices = @transform_0, window_bounds = array<i64: 8, 3>}, {pipeline_mode = #tpu.pipeline_mode<synchronous>, transform_indices = @transform_1, window_bounds = array<i64: 3, 128>}, {pipeline_mode = #tpu.pipeline_mode<synchronous>, transform_indices = @transform_2, window_bounds = array<i64: 1, 128>}, {pipeline_mode = #tpu.pipeline_mode<synchronous>, transform_indices = @transform_3, window_bounds = array<i64: 128, 128>}, {pipeline_mode = #tpu.pipeline_mode<synchronous>, transform_indices = @transform_4, window_bounds = array<i64: 1, 128>}, {pipeline_mode = #tpu.pipeline_mode<synchronous>, transform_indices = @transform_5, window_bounds = array<i64: 128, 128>}, {pipeline_mode = #tpu.pipeline_mode<synchronous>, transform_indices = @transform_6, window_bounds = array<i64: 1, 128>}, {transform_indices = @transform_7, window_bounds = array<i64: 8, 8>}]} {
    %c0 = arith.constant 0 : index
    %c0_0 = arith.constant 0 : index
    %0 = vector.load %arg1[%c0, %c0_0] : memref<8x3xf32, #tpu.memory_space<vmem>>, vector<8x3xf32>
    %1 = arith.truncf %0 : vector<8x3xf32> to vector<8x3xbf16>
    %c0_1 = arith.constant 0 : index
    %c0_2 = arith.constant 0 : index
    %2 = vector.load %arg2[%c0_1, %c0_2] : memref<3x128xbf16, #tpu.memory_space<vmem>>, vector<3x128xbf16>
    %cst = arith.constant dense<0.000000e+00> : vector<8x128xf32>
    %3 = tpu.matmul %1, %2, %cst {dimension_numbers = #tpu.dot_dimension_numbers<[1], [0], [0], [1], [0, 0, 1, 1], [], []>} : vector<8x3xbf16>, vector<3x128xbf16>, vector<8x128xf32> -> vector<8x128xf32>
    %c0_3 = arith.constant 0 : index
    %c0_4 = arith.constant 0 : index
    %4 = vector.load %arg3[%c0_3, %c0_4] : memref<1x128xf32, #tpu.memory_space<vmem>>, vector<1x128xf32>
    %5 = vector.broadcast %4 : vector<1x128xf32> to vector<8x128xf32>
    %6 = arith.addf %3, %5 : vector<8x128xf32>
    %7 = math.tanh %6 : vector<8x128xf32>
    %8 = arith.truncf %7 : vector<8x128xf32> to vector<8x128xbf16>
    %c0_5 = arith.constant 0 : index
    %c0_6 = arith.constant 0 : index
    %9 = vector.load %arg4[%c0_5, %c0_6] : memref<128x128xbf16, #tpu.memory_space<vmem>>, vector<128x128xbf16>
    %cst_7 = arith.constant dense<0.000000e+00> : vector<8x128xf32>
    %10 = tpu.matmul %8, %9, %cst_7 {dimension_numbers = #tpu.dot_dimension_numbers<[1], [0], [0], [1], [0, 0, 1, 1], [], []>} : vector<8x128xbf16>, vector<128x128xbf16>, vector<8x128xf32> -> vector<8x128xf32>
    %c0_8 = arith.constant 0 : index
    %c0_9 = arith.constant 0 : index
    %11 = vector.load %arg5[%c0_8, %c0_9] : memref<1x128xf32, #tpu.memory_space<vmem>>, vector<1x128xf32>
    %12 = vector.broadcast %11 : vector<1x128xf32> to vector<8x128xf32>
    %13 = arith.addf %10, %12 : vector<8x128xf32>
    %14 = math.tanh %13 : vector<8x128xf32>
    %15 = arith.truncf %14 : vector<8x128xf32> to vector<8x128xbf16>
    %c0_10 = arith.constant 0 : index
    %c0_11 = arith.constant 0 : index
    %16 = vector.load %arg6[%c0_10, %c0_11] : memref<128x128xbf16, #tpu.memory_space<vmem>>, vector<128x128xbf16>
    %cst_12 = arith.constant dense<0.000000e+00> : vector<8x128xf32>
    %17 = tpu.matmul %15, %16, %cst_12 {dimension_numbers = #tpu.dot_dimension_numbers<[1], [0], [0], [1], [0, 0, 1, 1], [], []>} : vector<8x128xbf16>, vector<128x128xbf16>, vector<8x128xf32> -> vector<8x128xf32>
    %c0_13 = arith.constant 0 : index
    %c0_14 = arith.constant 0 : index
    %18 = vector.load %arg7[%c0_13, %c0_14] : memref<1x128xf32, #tpu.memory_space<vmem>>, vector<1x128xf32>
    %19 = vector.broadcast %18 : vector<1x128xf32> to vector<8x128xf32>
    %20 = arith.addf %17, %19 : vector<8x128xf32>
    %21 = vector.extract_strided_slice %20 {offsets = [0, 0], sizes = [8, 8], strides = [1, 1]} : vector<8x128xf32> to vector<8x8xf32>
    %c0_15 = arith.constant 0 : index
    %c0_16 = arith.constant 0 : index
    %22 = vector.load %arg8[%c0_15, %c0_16] : memref<8x8xf32, #tpu.memory_space<vmem>>, vector<8x8xf32>
    tpu.vector_store %arg8[%c0_15, %c0_16], %21 {strides = array<i32>} : memref<8x8xf32, #tpu.memory_space<vmem>>, vector<8x8xf32>,
    return
  }
  func.func @transform_0(%arg0: i32) -> (i32, i32) {
    %c0_i32 = arith.constant 0 : i32
    %c0_i32_0 = arith.constant 0 : i32
    return %arg0, %c0_i32 : i32, i32
  }
  func.func @transform_1(%arg0: i32) -> (i32, i32) {
    %c0_i32 = arith.constant 0 : i32
    %c0_i32_0 = arith.constant 0 : i32
    %c0_i32_1 = arith.constant 0 : i32
    return %c0_i32, %c0_i32_0 : i32, i32
  }
  func.func @transform_2(%arg0: i32) -> (i32, i32) {
    %c0_i32 = arith.constant 0 : i32
    %c0_i32_0 = arith.constant 0 : i32
    %c0_i32_1 = arith.constant 0 : i32
    return %c0_i32, %c0_i32_0 : i32, i32
  }
  func.func @transform_3(%arg0: i32) -> (i32, i32) {
    %c0_i32 = arith.constant 0 : i32
    %c0_i32_0 = arith.constant 0 : i32
    %c0_i32_1 = arith.constant 0 : i32
    return %c0_i32, %c0_i32_0 : i32, i32
  }
  func.func @transform_4(%arg0: i32) -> (i32, i32) {
    %c0_i32 = arith.constant 0 : i32
    %c0_i32_0 = arith.constant 0 : i32
    %c0_i32_1 = arith.constant 0 : i32
    return %c0_i32, %c0_i32_0 : i32, i32
  }
  func.func @transform_5(%arg0: i32) -> (i32, i32) {
    %c0_i32 = arith.constant 0 : i32
    %c0_i32_0 = arith.constant 0 : i32
    %c0_i32_1 = arith.constant 0 : i32
    return %c0_i32, %c0_i32_0 : i32, i32
  }
  func.func @transform_6(%arg0: i32) -> (i32, i32) {
    %c0_i32 = arith.constant 0 : i32
    %c0_i32_0 = arith.constant 0 : i32
    %c0_i32_1 = arith.constant 0 : i32
    return %c0_i32, %c0_i32_0 : i32, i32
  }
  func.func @transform_7(%arg0: i32) -> (i32, i32) {
    %c0_i32 = arith.constant 0 : i32
    %c0_i32_0 = arith.constant 0 : i32
    return %arg0, %c0_i32 : i32, i32
  }
}

</mosaic_0001>

<llo_original>
// kernel: tpu_custom_call.1
$region0: #{tpu_custom_call.1}
  #allocation0 [shape = 'u32[]', space=smem, size = 0x4, offset = 0x4, fixed_abs, tag = 'smem constant byte address 0x4 - core index']
  #allocation1 [shape = 'u32[144,128]{1,0:T(1,128)}', space=vmem, size = 0x12000, scoped, tag = 'internal scratch']
  %s0 = inlined_call_operand.vmem [shape: f32[8,3], index: 0, kind: input, shape index: {}]
  %s1 = inlined_call_operand.vmem [shape: bf16[3,128], index: 1, kind: input, shape index: {}]
  %s2 = inlined_call_operand.vmem [shape: f32[1,128], index: 2, kind: input, shape index: {}]
  %s3 = inlined_call_operand.hbm [shape: bf16[128,128], index: 3, kind: input, shape index: {}]
  %s4 = inlined_call_operand.vmem [shape: f32[1,128], index: 4, kind: input, shape index: {}]
  %s5 = inlined_call_operand.hbm [shape: bf16[128,128], index: 5, kind: input, shape index: {}]
  %s6 = inlined_call_operand.vmem [shape: f32[1,128], index: 6, kind: input, shape index: {}]
  %s7 = inlined_call_operand.hbm [shape: f32[8,8], index: 7, kind: output, shape index: {}]
  %s8 = sld [smem:[#allocation0]]
  $region46: #{tpu_custom_call.1} parent=0
    _
  %s10 = ssub.s32 1, %s8
  %s11 = scalar_select 0, %s10, %s8
  $region1: #{tpu_custom_call.1} parent=0
    #allocation2 [shape = 'u8[32768]{0}', space=vmem, size = 0x8000, scoped, tag = 'input window, operand 3, single buffered']
    #allocation3 [shape = 's32[1]{0}', space=sflag, size = 0x4, scoped, tag = 'scoped memory for tpu_custom_call.1']
    #allocation4 [shape = 's32[1]{0}', space=sflag, size = 0x4, scoped, tag = 'scoped memory for tpu_custom_call.1']
    #allocation5 [shape = 'u8[32768]{0}', space=vmem, size = 0x8000, scoped, tag = 'input window, operand 5, single buffered']
    #allocation6 [shape = 's32[1]{0}', space=sflag, size = 0x4, scoped, tag = 'scoped memory for tpu_custom_call.1']
    #allocation7 [shape = 'u8[4096]{0}', space=vmem, size = 0x1000, scoped, tag = 'output window, operand 0, single buffered']
    %12 = vsyncpa [#allocation3], 0
    %13 = vsyncpa [#allocation6], 0
    %14 = vsyncpa [#allocation4], 0
    // Predicated region
    $region2: #{tpu_custom_call.1} parent=1 // pred_check
      _
    $region3: #{tpu_custom_call.1} parent=1 // pred_check_branch
      %16 = sbr.rel (0) target = $region5
    $region4: #{tpu_custom_call.1} parent=1 // pred_region
      _
    $region5: #{tpu_custom_call.1} parent=1 // pred_fallthru
      _
    // Predicated region
    $region6: #{tpu_custom_call.1} parent=1 // pred_check
      _
    $region7: #{tpu_custom_call.1} parent=1 // pred_check_branch
      %18 = sbr.rel (0) target = $region9
    $region8: #{tpu_custom_call.1} parent=1 // pred_region
      _
    $region9: #{tpu_custom_call.1} parent=1 // pred_fallthru
      _
    // Predicated region
    $region10: #{tpu_custom_call.1} parent=1 // pred_check
      _
    $region11: #{tpu_custom_call.1} parent=1 // pred_check_branch
      %20 = sbr.rel (0) target = $region13
    $region12: #{tpu_custom_call.1} parent=1 // pred_region
      _
    $region13: #{tpu_custom_call.1} parent=1 // pred_fallthru
      _
    // Predicated region
    $region14: #{tpu_custom_call.1} parent=1 // pred_check
      _
    $region15: #{tpu_custom_call.1} parent=1 // pred_check_branch
      %22 = sbr.rel (0) target = $region17
    $region16: #{tpu_custom_call.1} parent=1 // pred_region
      %s24 = ssub.s32 1024, 1024
      %25 = vsyncadd [#allocation3], %s24
      %s26 = sshll.u32 [#allocation2], 4
      %s27 = int_to_ptr.vmem [resolvable:$true] %s26
      %32 = dma.hbm_to_vmem [thread:$0]  %s3, 1024, %s27, [#allocation3], 64, 64, 4
    $region17: #{tpu_custom_call.1} parent=1 // pred_fallthru
      _
    // Predicated region
    $region18: #{tpu_custom_call.1} parent=1 // pred_check
      _
    $region19: #{tpu_custom_call.1} parent=1 // pred_check_branch
      %34 = sbr.rel (0) target = $region21
    $region20: #{tpu_custom_call.1} parent=1 // pred_region
      _
    $region21: #{tpu_custom_call.1} parent=1 // pred_fallthru
      _
    // Predicated region
    $region22: #{tpu_custom_call.1} parent=1 // pred_check
      _
    $region23: #{tpu_custom_call.1} parent=1 // pred_check_branch
      %36 = sbr.rel (0) target = $region25
    $region24: #{tpu_custom_call.1} parent=1 // pred_region
      %s38 = ssub.s32 1024, 1024
      %39 = vsyncadd [#allocation6], %s38
      %s40 = sshll.u32 [#allocation5], 4
      %s41 = int_to_ptr.vmem [resolvable:$true] %s40
      %46 = dma.hbm_to_vmem [thread:$0]  %s5, 1024, %s41, [#allocation6], 64, 64, 4
    $region25: #{tpu_custom_call.1} parent=1 // pred_fallthru
      _
    // Predicated region
    $region26: #{tpu_custom_call.1} parent=1 // pred_check
      _
    $region27: #{tpu_custom_call.1} parent=1 // pred_check_branch
      %48 = sbr.rel (0) target = $region29
    $region28: #{tpu_custom_call.1} parent=1 // pred_region
      _
    $region29: #{tpu_custom_call.1} parent=1 // pred_fallthru
      _
    // Predicated region
    $region30: #{tpu_custom_call.1} parent=1 // pred_check
      _
    $region31: #{tpu_custom_call.1} parent=1 // pred_check_branch
      %50 = sbr.rel (0) target = $region33
    $region32: #{tpu_custom_call.1} parent=1 // pred_region
      %51 = dma.done [#allocation3], 1024
    $region33: #{tpu_custom_call.1} parent=1 // pred_fallthru
      _
    // Predicated region
    $region34: #{tpu_custom_call.1} parent=1 // pred_check
      _
    $region35: #{tpu_custom_call.1} parent=1 // pred_check_branch
      %53 = sbr.rel (0) target = $region37
    $region36: #{tpu_custom_call.1} parent=1 // pred_region
      %54 = dma.done [#allocation6], 1024
    $region37: #{tpu_custom_call.1} parent=1 // pred_fallthru
      _
    %v56 = vld [vmem:[%s0] sm:$0xff]
    %v57 = vpack.c.bf16 %v56, %v56
    %v58 = vld [vmem:[%s1] sm:$0x3]
    %v59 = vld [vmem:[%s2] sm:$0x1]
    %v61 = vlaneseq
    %v62 = vshrl.u32 %v61, 7
    %v63 = vsub.s32 0, %v62
    %v64 = vrot.slane %v59, %v63
    %vm66 = vcmask 23552
    %v68 = vsel %vm66, %v57, 0
    %vm70 = vcmask 1040384
    %vm71 = vcmask 1041408
    %v72 = vsel %vm70, 4294967295, 65535
    %v73 = vsel %vm71, %v72, 0
    %v75 = vand.u32 %v58, %v73
    %77 = vmatprep.subr.bf16.mxu0 0
    %78 = vmatpush1.bf16.msra.mxu0 %v75
    %79 = vmatprep.subr.bf16.mxu0 0
    %80 = vmatpush1.bf16.msra.mxu0 0
    %81 = vmatprep.subr.bf16.mxu0 0
    %82 = vmatpush1.bf16.msra.mxu0 0
    %83 = vmatprep.subr.bf16.mxu0 0
    %84 = vmatpush1.bf16.msra.mxu0 0
    %85 = vmatprep.subr.bf16.mxu0 0
    %86 = vmatpush1.bf16.msra.mxu0 0
    %87 = vmatprep.subr.bf16.mxu0 0
    %88 = vmatpush1.bf16.msra.mxu0 0
    %89 = vmatprep.subr.bf16.mxu0 0
    %90 = vmatpush1.bf16.msra.mxu0 0
    %91 = vmatprep.subr.bf16.mxu0 0
    %92 = vmatpush1.bf16.msra.mxu0 0
    %93 = vmatprep.subr.bf16.mxu0 0
    %94 = vmatpush1.bf16.msra.mxu0 0
    %95 = vmatprep.subr.bf16.mxu0 0
    %96 = vmatpush1.bf16.msra.mxu0 0
    %97 = vmatprep.subr.bf16.mxu0 0
    %98 = vmatpush1.bf16.msra.mxu0 0
    %99 = vmatprep.subr.bf16.mxu0 0
    %100 = vmatpush1.bf16.msra.mxu0 0
    %101 = vmatprep.subr.bf16.mxu0 0
    %102 = vmatpush1.bf16.msra.mxu0 0
    %103 = vmatprep.subr.bf16.mxu0 0
    %104 = vmatpush1.bf16.msra.mxu0 0
    %105 = vmatprep.subr.bf16.mxu0 0
    %106 = vmatpush1.bf16.msra.mxu0 0
    %107 = vmatprep.subr.bf16.mxu0 0
    %108 = vmatpush1.bf16.msra.mxu0 0
    %109 = vmatprep.mubr.bf16.mxu0 0
    %110 = vmatmul.mubr.bf16.gmra.mrb[0].mxu0 %v68
    %v111 = vpop.f32.mrb[0].mxu0
    %v112 = vadd.f32 %v64, %v111
    %v113 = vpop.f32.mrb[0].mxu0
    %v114 = vpop.f32.mrb[0].mxu0
    %v115 = vpop.f32.mrb[0].mxu0
    %116 = vdwg.mxu0
    %v117 = vtanh.pop %v112
    %v118 = vpack.c.bf16 %v117, %v117
    %v119 = vld [vmem:[#allocation2] sm:$0xf]
    %v120 = vld [vmem:[#allocation2 + $0x4] sm:$0xf]
    %v121 = vld [vmem:[#allocation2 + $0x8] sm:$0xf]
    %v122 = vld [vmem:[#allocation2 + $0xc] sm:$0xf]
    %v123 = vld [vmem:[#allocation2 + $0x10] sm:$0xf]
    %v124 = vld [vmem:[#allocation2 + $0x14] sm:$0xf]
    %v125 = vld [vmem:[#allocation2 + $0x18] sm:$0xf]
    %v126 = vld [vmem:[#allocation2 + $0x1c] sm:$0xf]
    %v127 = vld [vmem:[#allocation2 + $0x20] sm:$0xf]
    %v128 = vld [vmem:[#allocation2 + $0x24] sm:$0xf]
    %v129 = vld [vmem:[#allocation2 + $0x28] sm:$0xf]
    %v130 = vld [vmem:[#allocation2 + $0x2c] sm:$0xf]
    %v131 = vld [vmem:[#allocation2 + $0x30] sm:$0xf]
    %v132 = vld [vmem:[#allocation2 + $0x34] sm:$0xf]
    %v133 = vld [vmem:[#allocation2 + $0x38] sm:$0xf]
    %v134 = vld [vmem:[#allocation2 + $0x3c] sm:$0xf]
    %v135 = vld [vmem:[%s4] sm:$0x1]
    %v137 = vlaneseq
    %v138 = vshrl.u32 %v137, 7
    %v139 = vsub.s32 0, %v138
    %v140 = vrot.slane %v135, %v139
    %v158 = vunpack.c.l.b16 %v119
    %v159 = vunpack.c.l.b16 %v120
    %v160 = vunpack.c.l.b16 %v121
    %v161 = vunpack.c.l.b16 %v122
    %v162 = vunpack.c.l.b16 %v123
    %v163 = vunpack.c.l.b16 %v124
    %v164 = vunpack.c.l.b16 %v125
    %v165 = vunpack.c.l.b16 %v126
    %v166 = vunpack.c.l.b16 %v127
    %v167 = vunpack.c.l.b16 %v128
    %v168 = vunpack.c.l.b16 %v129
    %v169 = vunpack.c.l.b16 %v130
    %v170 = vunpack.c.l.b16 %v131
    %v171 = vunpack.c.l.b16 %v132
    %v172 = vunpack.c.l.b16 %v133
    %v173 = vunpack.c.l.b16 %v134
    %v174 = vpack.c.b16 %v159, %v158
    %v175 = vpack.c.b16 %v161, %v160
    %v176 = vpack.c.b16 %v163, %v162
    %v177 = vpack.c.b16 %v165, %v164
    %v178 = vpack.c.b16 %v167, %v166
    %v179 = vpack.c.b16 %v169, %v168
    %v180 = vpack.c.b16 %v171, %v170
    %v181 = vpack.c.b16 %v173, %v172
    %190 = vmatprep.subr.bf16.mxu0 0
    %191 = vmatpush1.bf16.msra.mxu0 %v174
    %192 = vmatprep.subr.bf16.mxu0 0
    %193 = vmatpush1.bf16.msra.mxu0 %v175
    %194 = vmatprep.subr.bf16.mxu0 0
    %195 = vmatpush1.bf16.msra.mxu0 %v176
    %196 = vmatprep.subr.bf16.mxu0 0
    %197 = vmatpush1.bf16.msra.mxu0 %v177
    %198 = vmatprep.subr.bf16.mxu0 0
    %199 = vmatpush1.bf16.msra.mxu0 %v178
    %200 = vmatprep.subr.bf16.mxu0 0
    %201 = vmatpush1.bf16.msra.mxu0 %v179
    %202 = vmatprep.subr.bf16.mxu0 0
    %203 = vmatpush1.bf16.msra.mxu0 %v180
    %204 = vmatprep.subr.bf16.mxu0 0
    %205 = vmatpush1.bf16.msra.mxu0 %v181
    %206 = vmatprep.subr.bf16.mxu0 0
    %207 = vmatpush1.bf16.msra.mxu0 0
    %208 = vmatprep.subr.bf16.mxu0 0
    %209 = vmatpush1.bf16.msra.mxu0 0
    %210 = vmatprep.subr.bf16.mxu0 0
    %211 = vmatpush1.bf16.msra.mxu0 0
    %212 = vmatprep.subr.bf16.mxu0 0
    %213 = vmatpush1.bf16.msra.mxu0 0
    %214 = vmatprep.subr.bf16.mxu0 0
    %215 = vmatpush1.bf16.msra.mxu0 0
    %216 = vmatprep.subr.bf16.mxu0 0
    %217 = vmatpush1.bf16.msra.mxu0 0
    %218 = vmatprep.subr.bf16.mxu0 0
    %219 = vmatpush1.bf16.msra.mxu0 0
    %220 = vmatprep.subr.bf16.mxu0 0
    %221 = vmatpush1.bf16.msra.mxu0 0
    %222 = vmatprep.mubr.bf16.mxu0 0
    %223 = vmatmul.mubr.bf16.gmra.mrb[0].mxu0 %v118
    %v224 = vpop.f32.mrb[0].mxu0
    %v225 = vadd.f32 %v140, %v224
    %v226 = vpop.f32.mrb[0].mxu0
    %v227 = vpop.f32.mrb[0].mxu0
    %v228 = vpop.f32.mrb[0].mxu0
    %229 = vdwg.mxu0
    %v230 = vtanh.pop %v225
    %v231 = vpack.c.bf16 %v230, %v230
    %v232 = vld [vmem:[#allocation5] sm:$0xf]
    %v233 = vld [vmem:[#allocation5 + $0x4] sm:$0xf]
    %v234 = vld [vmem:[#allocation5 + $0x8] sm:$0xf]
    %v235 = vld [vmem:[#allocation5 + $0xc] sm:$0xf]
    %v236 = vld [vmem:[#allocation5 + $0x10] sm:$0xf]
    %v237 = vld [vmem:[#allocation5 + $0x14] sm:$0xf]
    %v238 = vld [vmem:[#allocation5 + $0x18] sm:$0xf]
    %v239 = vld [vmem:[#allocation5 + $0x1c] sm:$0xf]
    %v240 = vld [vmem:[#allocation5 + $0x20] sm:$0xf]
    %v241 = vld [vmem:[#allocation5 + $0x24] sm:$0xf]
    %v242 = vld [vmem:[#allocation5 + $0x28] sm:$0xf]
    %v243 = vld [vmem:[#allocation5 + $0x2c] sm:$0xf]
    %v244 = vld [vmem:[#allocation5 + $0x30] sm:$0xf]
    %v245 = vld [vmem:[#allocation5 + $0x34] sm:$0xf]
    %v246 = vld [vmem:[#allocation5 + $0x38] sm:$0xf]
    %v247 = vld [vmem:[#allocation5 + $0x3c] sm:$0xf]
    %v248 = vld [vmem:[%s6] sm:$0x1]
    %v250 = vlaneseq
    %v251 = vshrl.u32 %v250, 7
    %v252 = vsub.s32 0, %v251
    %v253 = vrot.slane %v248, %v252
    %v271 = vunpack.c.l.b16 %v232
    %v272 = vunpack.c.l.b16 %v233
    %v273 = vunpack.c.l.b16 %v234
    %v274 = vunpack.c.l.b16 %v235
    %v275 = vunpack.c.l.b16 %v236
    %v276 = vunpack.c.l.b16 %v237
    %v277 = vunpack.c.l.b16 %v238
    %v278 = vunpack.c.l.b16 %v239
    %v279 = vunpack.c.l.b16 %v240
    %v280 = vunpack.c.l.b16 %v241
    %v281 = vunpack.c.l.b16 %v242
    %v282 = vunpack.c.l.b16 %v243
    %v283 = vunpack.c.l.b16 %v244
    %v284 = vunpack.c.l.b16 %v245
    %v285 = vunpack.c.l.b16 %v246
    %v286 = vunpack.c.l.b16 %v247
    %v287 = vpack.c.b16 %v272, %v271
    %v288 = vpack.c.b16 %v274, %v273
    %v289 = vpack.c.b16 %v276, %v275
    %v290 = vpack.c.b16 %v278, %v277
    %v291 = vpack.c.b16 %v280, %v279
    %v292 = vpack.c.b16 %v282, %v281
    %v293 = vpack.c.b16 %v284, %v283
    %v294 = vpack.c.b16 %v286, %v285
    %303 = vmatprep.subr.bf16.mxu0 0
    %304 = vmatpush1.bf16.msra.mxu0 %v287
    %305 = vmatprep.subr.bf16.mxu0 0
    %306 = vmatpush1.bf16.msra.mxu0 %v288
    %307 = vmatprep.subr.bf16.mxu0 0
    %308 = vmatpush1.bf16.msra.mxu0 %v289
    %309 = vmatprep.subr.bf16.mxu0 0
    %310 = vmatpush1.bf16.msra.mxu0 %v290
    %311 = vmatprep.subr.bf16.mxu0 0
    %312 = vmatpush1.bf16.msra.mxu0 %v291
    %313 = vmatprep.subr.bf16.mxu0 0
    %314 = vmatpush1.bf16.msra.mxu0 %v292
    %315 = vmatprep.subr.bf16.mxu0 0
    %316 = vmatpush1.bf16.msra.mxu0 %v293
    %317 = vmatprep.subr.bf16.mxu0 0
    %318 = vmatpush1.bf16.msra.mxu0 %v294
    %319 = vmatprep.subr.bf16.mxu0 0
    %320 = vmatpush1.bf16.msra.mxu0 0
    %321 = vmatprep.subr.bf16.mxu0 0
    %322 = vmatpush1.bf16.msra.mxu0 0
    %323 = vmatprep.subr.bf16.mxu0 0
    %324 = vmatpush1.bf16.msra.mxu0 0
    %325 = vmatprep.subr.bf16.mxu0 0
    %326 = vmatpush1.bf16.msra.mxu0 0
    %327 = vmatprep.subr.bf16.mxu0 0
    %328 = vmatpush1.bf16.msra.mxu0 0
    %329 = vmatprep.subr.bf16.mxu0 0
    %330 = vmatpush1.bf16.msra.mxu0 0
    %331 = vmatprep.subr.bf16.mxu0 0
    %332 = vmatpush1.bf16.msra.mxu0 0
    %333 = vmatprep.subr.bf16.mxu0 0
    %334 = vmatpush1.bf16.msra.mxu0 0
    %335 = vmatprep.mubr.bf16.mxu0 0
    %336 = vmatmul.mubr.bf16.gmra.mrb[0].mxu0 %v231
    %v337 = vpop.f32.mrb[0].mxu0
    %v338 = vadd.f32 %v253, %v337
    %v339 = vpop.f32.mrb[0].mxu0
    %v340 = vpop.f32.mrb[0].mxu0
    %v341 = vpop.f32.mrb[0].mxu0
    %342 = vdwg.mxu0
    %vm343 = vcmask 64512
    %344 = vst.msk [vmem:[#allocation7] sm:$0xff] %vm343, %v338
    // Predicated region
    $region38: #{tpu_custom_call.1} parent=1 // pred_check
      _
    $region39: #{tpu_custom_call.1} parent=1 // pred_check_branch
      %346 = sbr.rel (0) target = $region41
    $region40: #{tpu_custom_call.1} parent=1 // pred_region
      %s348 = ssub.s32 128, 128
      %349 = vsyncadd [#allocation4], %s348
      %s351 = sshll.u32 [#allocation7], 4
      %s352 = int_to_ptr.vmem [resolvable:$true] %s351
      %354 = dma.vmem_to_hbm [thread:$0]  %s352, 128, %s7, [#allocation4]
    $region41: #{tpu_custom_call.1} parent=1 // pred_fallthru
      _
    // Predicated region
    $region42: #{tpu_custom_call.1} parent=1 // pred_check
      _
    $region43: #{tpu_custom_call.1} parent=1 // pred_check_branch
      %356 = sbr.rel (0) target = $region45
    $region44: #{tpu_custom_call.1} parent=1 // pred_region
      %357 = dma.done [#allocation4], 128
    $region45: #{tpu_custom_call.1} parent=1 // pred_fallthru
      _
    %358 = vsyncpa [#allocation3], 1
    %359 = vsyncpa [#allocation6], 1
    %360 = vsyncpa [#allocation4], 1

</llo_original>
